<compile_context>
chip_gen: v6e
topology: v6e:2x2x1
jax: 0.10.0
libtpu: 0.0.40
codegen_flags: <defaults>
</compile_context>

<pallas_src>
import functools

import jax
import jax.numpy as jnp
from jax.experimental import pallas as pl
from jax.experimental.pallas import tpu as pltpu


def _mhsa2_kernel(x_ref, wq_ref, bq_ref, wk_ref, bk_ref, o_ref, *scratch,
                  num_heads, head_dim, softmax_bf16, direct_store):
    # x_ref  : (1, N, C)  one batch element, f32
    # wq_ref : (C, C)     Wq^T * scale, bf16 (scale pre-folded in wrapper)
    # bq_ref : (1, C)     bq * scale, f32
    # wk_ref : (C, C)     Wk^T, bf16
    # bk_ref : (1, C)     f32
    # o_ref  : (1, N, C)  lane-dense full-width output block
    # scratch: () if direct_store else ((N, C) f32 VMEM,)
    x = x_ref[0].astype(jnp.bfloat16)                                   # (N, C)

    # Full-width projections: MXU output width = C, f32 accumulation, then a
    # single cast to bf16 (halves resident q/k VMEM; matmuls consume bf16).
    q = (jnp.dot(x, wq_ref[...], preferred_element_type=jnp.float32)
         + bq_ref[...]).astype(jnp.bfloat16)                            # (N, C)
    k = (jnp.dot(x, wk_ref[...], preferred_element_type=jnp.float32)
         + bk_ref[...]).astype(jnp.bfloat16)                            # (N, C)

    for h in range(num_heads):                        # small static head loop
        lo = h * head_dim
        qh = q[:, lo:lo + head_dim]                                     # bf16
        kh = k[:, lo:lo + head_dim]                                     # bf16
        vh = kh                                       # module quirk: v = self.k(x)

        s = jnp.dot(qh, kh.T, preferred_element_type=jnp.float32)       # (N, N) f32
        s = s - jnp.max(s, axis=-1, keepdims=True)
        if softmax_bf16:
            # v6e/v7x: bf16 EUP/VPU — halves (N, N) exp traffic; denom stays f32.
            p = jnp.exp(s.astype(jnp.bfloat16))
        else:
            # v5e: no bf16 VPU/EUP — keep softmax math in f32.
            p = jnp.exp(s)
        denom = jnp.sum(p, axis=-1, keepdims=True, dtype=jnp.float32)   # (N, 1)

        # Normalize after the PV matmul (O(N*dh) not O(N*N)); approx reciprocal
        # uses the otherwise-idle EUP slot.
        oh = jnp.dot(p.astype(jnp.bfloat16), vh,
                     preferred_element_type=jnp.float32)                # (N, dh)
        oh = oh * pl.reciprocal(denom, approx=True)

        if direct_store:
            # head_dim % 128 == 0: lane-aligned, unmasked per-head store.
            o_ref[0, :, lo:lo + head_dim] = oh.astype(o_ref.dtype)
        else:
            scratch[0][:, lo:lo + head_dim] = oh

    if not direct_store:
        # Single lane-dense (N, C) store from the VMEM scratch.
        o_ref[0] = scratch[0][...].astype(o_ref.dtype)


def mhsa2_forward(x, params, num_heads):
    """x: (B, N, C) float32.  params: PyTorch-Linear-layout q/k(/v) weights."""
    B, N, C = x.shape
    H = num_heads
    assert C % H == 0, "dim must be divisible by num_heads"
    dh = C // H
    # Module uses x.shape[-1] ** -0.5 (FULL dim, not head_dim) — intentional quirk.
    scale = float(C) ** (-0.5)

    # PyTorch Linear: y = x @ W.T + b, W is (out, in).  Pre-transpose once, fold
    # the softmax scale into the Q weights/bias, cast weights to bf16 for the
    # MXU (accumulation stays f32 in-kernel).
    wqT = (params["wq"].astype(jnp.float32).T * scale).astype(jnp.bfloat16)   # (C, C)
    bq = (params["bq"].astype(jnp.float32) * scale).reshape(1, C)             # (1, C)
    wkT = params["wk"].astype(jnp.float32).T.astype(jnp.bfloat16)             # (C, C)
    bk = params["bk"].astype(jnp.float32).reshape(1, C)                       # (1, C)
    # params["wv"]/["bv"] exist in the module (self.v) but are unused: v = self.k(x).

    direct_store = (dh % 128 == 0)

    # v5e has no bf16 VPU/EUP -> keep softmax math f32 there; bf16 on v6e/v7x.
    try:
        kind = jax.devices()[0].device_kind.lower()
    except Exception:
        kind = ""
    softmax_bf16 = ("v6" in kind) or ("v7" in kind)

    # Generation-aware VMEM limit (v7x has only 64 MiB physical).
    try:
        vmem_cap = int(pltpu.get_tpu_info().vmem_capacity_bytes)
    except Exception:
        vmem_cap = 64 * 1024 * 1024
    vmem_limit = min(100 * 1024 * 1024, (vmem_cap * 3) // 4)

    # Advisory cost estimate so XLA schedules neighbors around this call.
    flops = int(B * (4 * N * C * C + 4 * N * N * C))
    cost = pl.CostEstimate(
        flops=flops,
        transcendentals=int(B * H * N * N),
        bytes_accessed=int(2 * B * N * C * 4 + 2 * C * C * 2 + 2 * C * 4),
    )

    kernel = functools.partial(_mhsa2_kernel, num_heads=H, head_dim=dh,
                               softmax_bf16=softmax_bf16,
                               direct_store=direct_store)

    # Weights/biases never change across the grid -> single-buffer them.
    resident_mode = pl.Buffered(1)
    in_specs = [
        pl.BlockSpec((1, N, C), lambda b: (b, 0, 0)),                      # x (per batch)
        pl.BlockSpec((C, C), lambda b: (0, 0), pipeline_mode=resident_mode),  # Wq^T*scale
        pl.BlockSpec((1, C), lambda b: (0, 0), pipeline_mode=resident_mode),  # bq*scale
        pl.BlockSpec((C, C), lambda b: (0, 0), pipeline_mode=resident_mode),  # Wk^T
        pl.BlockSpec((1, C), lambda b: (0, 0), pipeline_mode=resident_mode),  # bk
    ]
    scratch_shapes = [] if direct_store else [pltpu.VMEM((N, C), jnp.float32)]

    return pl.pallas_call(
        kernel,
        out_shape=jax.ShapeDtypeStruct((B, N, C), x.dtype),
        grid_spec=pltpu.PrefetchScalarGridSpec(
            num_scalar_prefetch=0,
            grid=(B,),
            in_specs=in_specs,
            out_specs=pl.BlockSpec((1, N, C), lambda b: (b, 0, 0)),
            scratch_shapes=scratch_shapes,
        ),
        compiler_params=pltpu.CompilerParams(
            dimension_semantics=("parallel",),        # shards batch across TCs
            vmem_limit_bytes=vmem_limit,
        ),
        cost_estimate=cost,
    )(x, wqT, bq, wkT, bk)


def _reference(x, params, num_heads):
    """Pure-JAX f32 reference replicating the PyTorch forward exactly."""
    B, N, C = x.shape
    H = num_heads
    q = x @ params["wq"].T + params["bq"]
    k = x @ params["wk"].T + params["bk"]
    v = k  # module quirk: v = self.k(x)
    q = q.reshape(B, N, H, -1).transpose(0, 2, 1, 3)
    k = k.reshape(B, N, H, -1).transpose(0, 2, 1, 3)
    v = v.reshape(B, N, H, -1).transpose(0, 2, 1, 3)
    attn = jnp.einsum("bhnd,bhmd->bhnm", q, k) * (C ** -0.5)
    attn = jax.nn.softmax(attn, axis=-1)
    out = jnp.einsum("bhnm,bhmd->bhnd", attn, v)
    return out.transpose(0, 2, 1, 3).reshape(B, N, C)


def _make_params(key, C):
    kwq, kbq, kwk, kbk, kwv, kbv = jax.random.split(key, 6)
    return {
        "wq": jax.random.normal(kwq, (C, C), dtype=jnp.float32) * 0.1,
        "bq": jax.random.normal(kbq, (C,), dtype=jnp.float32) * 0.1,
        "wk": jax.random.normal(kwk, (C, C), dtype=jnp.float32) * 0.1,
        "bk": jax.random.normal(kbk, (C,), dtype=jnp.float32) * 0.1,
        # self.v is defined in __init__ but unused in forward (v = self.k(x)).
        "wv": jax.random.normal(kwv, (C, C), dtype=jnp.float32) * 0.1,
        "bv": jax.random.normal(kbv, (C,), dtype=jnp.float32) * 0.1,
    }


if __name__ == "__main__":
    key = jax.random.PRNGKey(0)
    k_small, k_real = jax.random.split(key, 2)

    # --- Small test (exercises the scratch / non-lane-aligned-head path) ------
    B, N, C, H = 2, 8, 32, 4
    kx, kp = jax.random.split(k_small)
    x = jax.random.normal(kx, (B, N, C), dtype=jnp.float32)
    params = _make_params(kp, C)

    out = jax.block_until_ready(mhsa2_forward(x, params, num_heads=H))
    ref = _reference(x, params, num_heads=H)
    assert out.shape == (B, N, C)
    # Tolerance accounts for bf16 MXU operands + approx reciprocal (f32 accum).
    assert jnp.allclose(out, ref, atol=3e-2, rtol=3e-2), "small-shape mismatch"

    # --- Realistic-shape test (dh=128 -> direct lane-aligned per-head stores) --
    B2, N2, C2, H2 = 2, 256, 256, 2
    kx2, kp2 = jax.random.split(k_real)
    x2 = jax.random.normal(kx2, (B2, N2, C2), dtype=jnp.float32)
    params2 = _make_params(kp2, C2)

    out2 = jax.block_until_ready(mhsa2_forward(x2, params2, num_heads=H2))
    ref2 = _reference(x2, params2, num_heads=H2)
    assert out2.shape == (B2, N2, C2)
    assert jnp.allclose(out2, ref2, atol=5e-2, rtol=5e-2), "realistic-shape mismatch"

    print("KERNEL_OK")
</pallas_src>

<mosaic_0001>
module attributes {stable_mosaic.version = 11 : i64} {
  func.func @_mhsa2_kernel(%arg0: i32, %arg1: memref<1x8x32xf32, #tpu.memory_space<vmem>>, %arg2: memref<32x32xbf16, #tpu.memory_space<vmem>>, %arg3: memref<1x32xf32, #tpu.memory_space<vmem>>, %arg4: memref<32x32xbf16, #tpu.memory_space<vmem>>, %arg5: memref<1x32xf32, #tpu.memory_space<vmem>>, %arg6: memref<1x8x32xf32, #tpu.memory_space<vmem>>, %arg7: memref<8x32xf32, #tpu.memory_space<vmem>>) attributes {dimension_semantics = [#tpu.dimension_semantics<parallel>], iteration_bounds = array<i64: 2>, scalar_prefetch = 0 : i64, scratch_operands = 1 : i64, tpu.core_type = #tpu.core_type<tc>, window_params = [{transform_indices = @transform_0, window_bounds = array<i64: 1, 8, 32>}, {pipeline_mode = #tpu.pipeline_mode<synchronous>, transform_indices = @transform_1, window_bounds = array<i64: 32, 32>}, {pipeline_mode = #tpu.pipeline_mode<synchronous>, transform_indices = @transform_2, window_bounds = array<i64: 1, 32>}, {pipeline_mode = #tpu.pipeline_mode<synchronous>, transform_indices = @transform_3, window_bounds = array<i64: 32, 32>}, {pipeline_mode = #tpu.pipeline_mode<synchronous>, transform_indices = @transform_4, window_bounds = array<i64: 1, 32>}, {transform_indices = @transform_5, window_bounds = array<i64: 1, 8, 32>}]} {
    %c0 = arith.constant 0 : index
    %c0_0 = arith.constant 0 : index
    %c0_1 = arith.constant 0 : index
    %0 = vector.load %arg1[%c0, %c0_0, %c0_1] : memref<1x8x32xf32, #tpu.memory_space<vmem>>, vector<1x8x32xf32>
    %1 = vector.shape_cast %0 : vector<1x8x32xf32> to vector<8x32xf32>
    %2 = arith.truncf %1 : vector<8x32xf32> to vector<8x32xbf16>
    %c0_2 = arith.constant 0 : index
    %c0_3 = arith.constant 0 : index
    %3 = vector.load %arg2[%c0_2, %c0_3] : memref<32x32xbf16, #tpu.memory_space<vmem>>, vector<32x32xbf16>
    %cst = arith.constant dense<0.000000e+00> : vector<8x32xf32>
    %4 = tpu.matmul %2, %3, %cst {dimension_numbers = #tpu.dot_dimension_numbers<[1], [0], [0], [1], [0, 0, 1, 1], [], []>} : vector<8x32xbf16>, vector<32x32xbf16>, vector<8x32xf32> -> vector<8x32xf32>
    %c0_4 = arith.constant 0 : index
    %c0_5 = arith.constant 0 : index
    %5 = vector.load %arg3[%c0_4, %c0_5] : memref<1x32xf32, #tpu.memory_space<vmem>>, vector<1x32xf32>
    %6 = vector.broadcast %5 : vector<1x32xf32> to vector<8x32xf32>
    %7 = arith.addf %4, %6 : vector<8x32xf32>
    %8 = arith.truncf %7 : vector<8x32xf32> to vector<8x32xbf16>
    %c0_6 = arith.constant 0 : index
    %c0_7 = arith.constant 0 : index
    %9 = vector.load %arg4[%c0_6, %c0_7] : memref<32x32xbf16, #tpu.memory_space<vmem>>, vector<32x32xbf16>
    %cst_8 = arith.constant dense<0.000000e+00> : vector<8x32xf32>
    %10 = tpu.matmul %2, %9, %cst_8 {dimension_numbers = #tpu.dot_dimension_numbers<[1], [0], [0], [1], [0, 0, 1, 1], [], []>} : vector<8x32xbf16>, vector<32x32xbf16>, vector<8x32xf32> -> vector<8x32xf32>
    %c0_9 = arith.constant 0 : index
    %c0_10 = arith.constant 0 : index
    %11 = vector.load %arg5[%c0_9, %c0_10] : memref<1x32xf32, #tpu.memory_space<vmem>>, vector<1x32xf32>
    %12 = vector.broadcast %11 : vector<1x32xf32> to vector<8x32xf32>
    %13 = arith.addf %10, %12 : vector<8x32xf32>
    %14 = arith.truncf %13 : vector<8x32xf32> to vector<8x32xbf16>
    %15 = vector.extract_strided_slice %8 {offsets = [0, 0], sizes = [8, 8], strides = [1, 1]} : vector<8x32xbf16> to vector<8x8xbf16>
    %16 = vector.extract_strided_slice %14 {offsets = [0, 0], sizes = [8, 8], strides = [1, 1]} : vector<8x32xbf16> to vector<8x8xbf16>
    %17 = tpu.transpose %16, [1, 0] : vector<8x8xbf16> -> vector<8x8xbf16>
    %cst_11 = arith.constant dense<0.000000e+00> : vector<8x8xf32>
    %18 = tpu.matmul %15, %17, %cst_11 {dimension_numbers = #tpu.dot_dimension_numbers<[1], [0], [0], [1], [0, 0, 1, 1], [], []>} : vector<8x8xbf16>, vector<8x8xbf16>, vector<8x8xf32> -> vector<8x8xf32>
    %cst_12 = arith.constant dense<0xFF800000> : vector<8xf32>
    %19 = vector.multi_reduction <maximumf>, %18, %cst_12 [1] : vector<8x8xf32> to vector<8xf32>
    %20 = vector.shape_cast %19 : vector<8xf32> to vector<8x1xf32>
    %21 = vector.broadcast %20 : vector<8x1xf32> to vector<8x8xf32>
    %22 = arith.subf %18, %21 : vector<8x8xf32>
    %23 = math.exp %22 : vector<8x8xf32>
    %cst_13 = arith.constant dense<0.000000e+00> : vector<8xf32>
    %24 = vector.multi_reduction <add>, %23, %cst_13 [1] : vector<8x8xf32> to vector<8xf32>
    %25 = vector.shape_cast %24 : vector<8xf32> to vector<8x1xf32>
    %26 = arith.truncf %23 : vector<8x8xf32> to vector<8x8xbf16>
    %cst_14 = arith.constant dense<0.000000e+00> : vector<8x8xf32>
    %27 = tpu.matmul %26, %16, %cst_14 {dimension_numbers = #tpu.dot_dimension_numbers<[1], [0], [0], [1], [0, 0, 1, 1], [], []>} : vector<8x8xbf16>, vector<8x8xbf16>, vector<8x8xf32> -> vector<8x8xf32>
    %28 = tpu.reciprocal %25 {approx = true} : vector<8x1xf32> -> vector<8x1xf32>
    %29 = vector.broadcast %28 : vector<8x1xf32> to vector<8x8xf32>
    %30 = arith.mulf %27, %29 : vector<8x8xf32>
    %c0_15 = arith.constant 0 : index
    %c0_16 = arith.constant 0 : index
    %31 = vector.load %arg7[%c0_15, %c0_16] : memref<8x32xf32, #tpu.memory_space<vmem>>, vector<8x8xf32>
    tpu.vector_store %arg7[%c0_15, %c0_16], %30 {strides = array<i32>} : memref<8x32xf32, #tpu.memory_space<vmem>>, vector<8x8xf32>,
    %32 = vector.extract_strided_slice %8 {offsets = [0, 8], sizes = [8, 8], strides = [1, 1]} : vector<8x32xbf16> to vector<8x8xbf16>
    %33 = vector.extract_strided_slice %14 {offsets = [0, 8], sizes = [8, 8], strides = [1, 1]} : vector<8x32xbf16> to vector<8x8xbf16>
    %34 = tpu.transpose %33, [1, 0] : vector<8x8xbf16> -> vector<8x8xbf16>
    %cst_17 = arith.constant dense<0.000000e+00> : vector<8x8xf32>
    %35 = tpu.matmul %32, %34, %cst_17 {dimension_numbers = #tpu.dot_dimension_numbers<[1], [0], [0], [1], [0, 0, 1, 1], [], []>} : vector<8x8xbf16>, vector<8x8xbf16>, vector<8x8xf32> -> vector<8x8xf32>
    %cst_18 = arith.constant dense<0xFF800000> : vector<8xf32>
    %36 = vector.multi_reduction <maximumf>, %35, %cst_18 [1] : vector<8x8xf32> to vector<8xf32>
    %37 = vector.shape_cast %36 : vector<8xf32> to vector<8x1xf32>
    %38 = vector.broadcast %37 : vector<8x1xf32> to vector<8x8xf32>
    %39 = arith.subf %35, %38 : vector<8x8xf32>
    %40 = math.exp %39 : vector<8x8xf32>
    %cst_19 = arith.constant dense<0.000000e+00> : vector<8xf32>
    %41 = vector.multi_reduction <add>, %40, %cst_19 [1] : vector<8x8xf32> to vector<8xf32>
    %42 = vector.shape_cast %41 : vector<8xf32> to vector<8x1xf32>
    %43 = arith.truncf %40 : vector<8x8xf32> to vector<8x8xbf16>
    %cst_20 = arith.constant dense<0.000000e+00> : vector<8x8xf32>
    %44 = tpu.matmul %43, %33, %cst_20 {dimension_numbers = #tpu.dot_dimension_numbers<[1], [0], [0], [1], [0, 0, 1, 1], [], []>} : vector<8x8xbf16>, vector<8x8xbf16>, vector<8x8xf32> -> vector<8x8xf32>
    %45 = tpu.reciprocal %42 {approx = true} : vector<8x1xf32> -> vector<8x1xf32>
    %46 = vector.broadcast %45 : vector<8x1xf32> to vector<8x8xf32>
    %47 = arith.mulf %44, %46 : vector<8x8xf32>
    %c0_21 = arith.constant 0 : index
    %c8 = arith.constant 8 : index
    %48 = vector.load %arg7[%c0_21, %c8] : memref<8x32xf32, #tpu.memory_space<vmem>>, vector<8x8xf32>
    tpu.vector_store %arg7[%c0_21, %c8], %47 {strides = array<i32>} : memref<8x32xf32, #tpu.memory_space<vmem>>, vector<8x8xf32>,
    %49 = vector.extract_strided_slice %8 {offsets = [0, 16], sizes = [8, 8], strides = [1, 1]} : vector<8x32xbf16> to vector<8x8xbf16>
    %50 = vector.extract_strided_slice %14 {offsets = [0, 16], sizes = [8, 8], strides = [1, 1]} : vector<8x32xbf16> to vector<8x8xbf16>
    %51 = tpu.transpose %50, [1, 0] : vector<8x8xbf16> -> vector<8x8xbf16>
    %cst_22 = arith.constant dense<0.000000e+00> : vector<8x8xf32>
    %52 = tpu.matmul %49, %51, %cst_22 {dimension_numbers = #tpu.dot_dimension_numbers<[1], [0], [0], [1], [0, 0, 1, 1], [], []>} : vector<8x8xbf16>, vector<8x8xbf16>, vector<8x8xf32> -> vector<8x8xf32>
    %cst_23 = arith.constant dense<0xFF800000> : vector<8xf32>
    %53 = vector.multi_reduction <maximumf>, %52, %cst_23 [1] : vector<8x8xf32> to vector<8xf32>
    %54 = vector.shape_cast %53 : vector<8xf32> to vector<8x1xf32>
    %55 = vector.broadcast %54 : vector<8x1xf32> to vector<8x8xf32>
    %56 = arith.subf %52, %55 : vector<8x8xf32>
    %57 = math.exp %56 : vector<8x8xf32>
    %cst_24 = arith.constant dense<0.000000e+00> : vector<8xf32>
    %58 = vector.multi_reduction <add>, %57, %cst_24 [1] : vector<8x8xf32> to vector<8xf32>
    %59 = vector.shape_cast %58 : vector<8xf32> to vector<8x1xf32>
    %60 = arith.truncf %57 : vector<8x8xf32> to vector<8x8xbf16>
    %cst_25 = arith.constant dense<0.000000e+00> : vector<8x8xf32>
    %61 = tpu.matmul %60, %50, %cst_25 {dimension_numbers = #tpu.dot_dimension_numbers<[1], [0], [0], [1], [0, 0, 1, 1], [], []>} : vector<8x8xbf16>, vector<8x8xbf16>, vector<8x8xf32> -> vector<8x8xf32>
    %62 = tpu.reciprocal %59 {approx = true} : vector<8x1xf32> -> vector<8x1xf32>
    %63 = vector.broadcast %62 : vector<8x1xf32> to vector<8x8xf32>
    %64 = arith.mulf %61, %63 : vector<8x8xf32>
    %c0_26 = arith.constant 0 : index
    %c16 = arith.constant 16 : index
    %65 = vector.load %arg7[%c0_26, %c16] : memref<8x32xf32, #tpu.memory_space<vmem>>, vector<8x8xf32>
    tpu.vector_store %arg7[%c0_26, %c16], %64 {strides = array<i32>} : memref<8x32xf32, #tpu.memory_space<vmem>>, vector<8x8xf32>,
    %66 = vector.extract_strided_slice %8 {offsets = [0, 24], sizes = [8, 8], strides = [1, 1]} : vector<8x32xbf16> to vector<8x8xbf16>
    %67 = vector.extract_strided_slice %14 {offsets = [0, 24], sizes = [8, 8], strides = [1, 1]} : vector<8x32xbf16> to vector<8x8xbf16>
    %68 = tpu.transpose %67, [1, 0] : vector<8x8xbf16> -> vector<8x8xbf16>
    %cst_27 = arith.constant dense<0.000000e+00> : vector<8x8xf32>
    %69 = tpu.matmul %66, %68, %cst_27 {dimension_numbers = #tpu.dot_dimension_numbers<[1], [0], [0], [1], [0, 0, 1, 1], [], []>} : vector<8x8xbf16>, vector<8x8xbf16>, vector<8x8xf32> -> vector<8x8xf32>
    %cst_28 = arith.constant dense<0xFF800000> : vector<8xf32>
    %70 = vector.multi_reduction <maximumf>, %69, %cst_28 [1] : vector<8x8xf32> to vector<8xf32>
    %71 = vector.shape_cast %70 : vector<8xf32> to vector<8x1xf32>
    %72 = vector.broadcast %71 : vector<8x1xf32> to vector<8x8xf32>
    %73 = arith.subf %69, %72 : vector<8x8xf32>
    %74 = math.exp %73 : vector<8x8xf32>
    %cst_29 = arith.constant dense<0.000000e+00> : vector<8xf32>
    %75 = vector.multi_reduction <add>, %74, %cst_29 [1] : vector<8x8xf32> to vector<8xf32>
    %76 = vector.shape_cast %75 : vector<8xf32> to vector<8x1xf32>
    %77 = arith.truncf %74 : vector<8x8xf32> to vector<8x8xbf16>
    %cst_30 = arith.constant dense<0.000000e+00> : vector<8x8xf32>
    %78 = tpu.matmul %77, %67, %cst_30 {dimension_numbers = #tpu.dot_dimension_numbers<[1], [0], [0], [1], [0, 0, 1, 1], [], []>} : vector<8x8xbf16>, vector<8x8xbf16>, vector<8x8xf32> -> vector<8x8xf32>
    %79 = tpu.reciprocal %76 {approx = true} : vector<8x1xf32> -> vector<8x1xf32>
    %80 = vector.broadcast %79 : vector<8x1xf32> to vector<8x8xf32>
    %81 = arith.mulf %78, %80 : vector<8x8xf32>
    %c0_31 = arith.constant 0 : index
    %c24 = arith.constant 24 : index
    %82 = vector.load %arg7[%c0_31, %c24] : memref<8x32xf32, #tpu.memory_space<vmem>>, vector<8x8xf32>
    tpu.vector_store %arg7[%c0_31, %c24], %81 {strides = array<i32>} : memref<8x32xf32, #tpu.memory_space<vmem>>, vector<8x8xf32>,
    %c0_32 = arith.constant 0 : index
    %c0_33 = arith.constant 0 : index
    %83 = vector.load %arg7[%c0_32, %c0_33] : memref<8x32xf32, #tpu.memory_space<vmem>>, vector<8x32xf32>
    %c0_34 = arith.constant 0 : index
    %c0_35 = arith.constant 0 : index
    %c0_36 = arith.constant 0 : index
    %84 = vector.load %arg6[%c0_34, %c0_35, %c0_36] : memref<1x8x32xf32, #tpu.memory_space<vmem>>, vector<1x8x32xf32>
    %85 = vector.shape_cast %84 : vector<1x8x32xf32> to vector<8x32xf32>
    %86 = vector.shape_cast %83 : vector<8x32xf32> to vector<1x8x32xf32>
    tpu.vector_store %arg6[%c0_34, %c0_35, %c0_36], %86 {strides = array<i32>} : memref<1x8x32xf32, #tpu.memory_space<vmem>>, vector<1x8x32xf32>,
    return
  }
  func.func @transform_0(%arg0: i32) -> (i32, i32, i32) {
    %c0_i32 = arith.constant 0 : i32
    %c0_i32_0 = arith.constant 0 : i32
    %c0_i32_1 = arith.constant 0 : i32
    return %arg0, %c0_i32, %c0_i32_0 : i32, i32, i32
  }
  func.func @transform_1(%arg0: i32) -> (i32, i32) {
    %c0_i32 = arith.constant 0 : i32
    %c0_i32_0 = arith.constant 0 : i32
    %c0_i32_1 = arith.constant 0 : i32
    return %c0_i32, %c0_i32_0 : i32, i32
  }
  func.func @transform_2(%arg0: i32) -> (i32, i32) {
    %c0_i32 = arith.constant 0 : i32
    %c0_i32_0 = arith.constant 0 : i32
    %c0_i32_1 = arith.constant 0 : i32
    return %c0_i32, %c0_i32_0 : i32, i32
  }
  func.func @transform_3(%arg0: i32) -> (i32, i32) {
    %c0_i32 = arith.constant 0 : i32
    %c0_i32_0 = arith.constant 0 : i32
    %c0_i32_1 = arith.constant 0 : i32
    return %c0_i32, %c0_i32_0 : i32, i32
  }
  func.func @transform_4(%arg0: i32) -> (i32, i32) {
    %c0_i32 = arith.constant 0 : i32
    %c0_i32_0 = arith.constant 0 : i32
    %c0_i32_1 = arith.constant 0 : i32
    return %c0_i32, %c0_i32_0 : i32, i32
  }
  func.func @transform_5(%arg0: i32) -> (i32, i32, i32) {
    %c0_i32 = arith.constant 0 : i32
    %c0_i32_0 = arith.constant 0 : i32
    %c0_i32_1 = arith.constant 0 : i32
    return %arg0, %c0_i32, %c0_i32_0 : i32, i32, i32
  }
}

</mosaic_0001>

<llo_original>
// kernel: tpu_custom_call.1
$region0: #{tpu_custom_call.1}
  #allocation0 [shape = 'u32[]', space=smem, size = 0x4, offset = 0x4, fixed_abs, tag = 'smem constant byte address 0x4 - core index']
  #allocation1 [shape = 'u32[144,128]{1,0:T(1,128)}', space=vmem, size = 0x12000, scoped, tag = 'internal scratch']
  #allocation2 [shape = 'f32[8,32]{1,0:T(8,128)}', space=vmem, size = 0x1000, scoped, tag = 'scratch operand']
  %s0 = inlined_call_operand.hbm [shape: f32[2,8,32], index: 0, kind: input, shape index: {}]
  %s1 = inlined_call_operand.hbm [shape: bf16[32,32], index: 1, kind: input, shape index: {}]
  %s2 = inlined_call_operand.vmem [shape: f32[1,32], index: 2, kind: input, shape index: {}]
  %s3 = inlined_call_operand.hbm [shape: bf16[32,32], index: 3, kind: input, shape index: {}]
  %s4 = inlined_call_operand.vmem [shape: f32[1,32], index: 4, kind: input, shape index: {}]
  %s5 = inlined_call_operand.hbm [shape: f32[2,8,32], index: 5, kind: output, shape index: {}]
  %s6 = sld [smem:[#allocation0]]
  $region65: #{tpu_custom_call.1} parent=0
    _
  %s8 = ssub.s32 1, %s6
  %s9 = scalar_select 0, %s8, %s6
  $region1: #{tpu_custom_call.1} parent=0
    #allocation3 [shape = 'u8[8192]{0}', space=vmem, size = 0x2000, scoped, tag = 'input window, operand 0']
    #allocation4 [shape = 's32[2]{0}', space=sflag, size = 0x8, scoped, tag = 'scoped memory for tpu_custom_call.1']
    #allocation5 [shape = 's32[2]{0}', space=sflag, size = 0x8, scoped, tag = 'scoped memory for tpu_custom_call.1']
    #allocation6 [shape = 'u8[8192]{0}', space=vmem, size = 0x2000, scoped, tag = 'input window, operand 1, single buffered']
    #allocation7 [shape = 's32[1]{0}', space=sflag, size = 0x4, scoped, tag = 'scoped memory for tpu_custom_call.1']
    #allocation8 [shape = 'u8[8192]{0}', space=vmem, size = 0x2000, scoped, tag = 'input window, operand 3, single buffered']
    #allocation9 [shape = 'u8[8192]{0}', space=vmem, size = 0x2000, scoped, tag = 'output window, operand 0']
    %10 = vsyncpa [#allocation4], 0
    %s11 = scalar_lea.sflag [#allocation4], 1
    %12 = vsyncpa %s11, 0
    %13 = vsyncpa [#allocation7], 0
    %14 = vsyncpa [#allocation5], 0
    %s15 = scalar_lea.sflag [#allocation5], 1
    %16 = vsyncpa %s15, 0
    loop: start=0, step=1, limit=4
    $region2: #{tpu_custom_call.1} parent=1 // loop_pre_header
      _
    $region3: #{tpu_custom_call.1} parent=1 // loop_header
      %s18 = sphi 0, %s22
      %p19 = scmp.ge.s32.totalorder %s18, 4
      %s28 = sphi 0, %s30
      %s31 = sphi 0, %s28
      %s32 = sphi 0, %s31
      %s48 = sphi 0, %s32
      %s52 = sphi 0, %s52
      %s54 = sphi 0, %s52
      %s55 = sphi 0, %s54
      %s69 = sphi 0, %s55
      %s73 = sphi 0, %s73
      %s75 = sphi 0, %s73
      %s76 = sphi 0, %s75
      %s90 = sphi 0, %s76
      %s94 = sphi 0, %s94
      %s96 = sphi 0, %s94
      %s97 = sphi 0, %s96
      %s111 = sphi 0, %s97
      %s115 = sphi 0, %s115
      %s117 = sphi 0, %s115
      %s118 = sphi 0, %s117
      %s132 = sphi 0, %s118
      %s138 = sphi 0, %s140
      %s141 = sphi 0, %s138
      %s142 = sphi 0, %s141
      %s158 = sphi 0, %s142
    $region4: #{tpu_custom_call.1} parent=1 // loop_header_branch
      %21 = sbr.rel (%p19) target = $region8
    $region5: #{tpu_custom_call.1} parent=1 // loop_body
      %s23 = ssub.s32 %s18, 1
      %s24 = ssub.s32 %s18, 2
      %s25 = sadd.s32 %s18, 1
      %s26 = ssub.s32 %s18, %s25
      %p27 = scmp.eq.s32.totalorder %s26, 0
      %s29 = sadd.s32 %s28, 1
      %s30 = scalar_select %p27, %s28, %s29
      %p33 = pneg %p27
      %p34 = scmp.eq.s32.totalorder %s18, 1
      %p35 = por %p33, %p34
      %p36 = scmp.ne.s32.totalorder %s28, %s31
      %p37 = scmp.eq.s32.totalorder %s18, 0
      %p38 = por %p36, %p37
      %p39 = scmp.ne.s32.totalorder %s28, %s31
      %p40 = scmp.eq.s32.totalorder %s23, 1
      %p41 = por %p39, %p40
      %p42 = scmp.ne.s32.totalorder %s31, %s32
      %p43 = scmp.eq.s32.totalorder %s23, 0
      %p44 = por %p42, %p43
      %p45 = scmp.ne.s32.totalorder %s31, %s32
      %p46 = scmp.eq.s32.totalorder %s24, 1
      %p47 = por %p45, %p46
      %p49 = scmp.ne.s32.totalorder %s32, %s48
      %p50 = scmp.eq.s32.totalorder %s24, 0
      %p51 = por %p49, %p50
      %s53 = sadd.s32 %s52, 1
      %p56 = scmp.eq.s32.totalorder %s18, 1
      %p57 = scmp.ne.s32.totalorder %s52, %s54
      %p58 = scmp.eq.s32.totalorder %s18, 0
      %p59 = por %p57, %p58
      %p60 = scmp.ne.s32.totalorder %s52, %s54
      %p61 = scmp.eq.s32.totalorder %s23, 1
      %p62 = por %p60, %p61
      %p63 = scmp.ne.s32.totalorder %s54, %s55
      %p64 = scmp.eq.s32.totalorder %s23, 0
      %p65 = por %p63, %p64
      %p66 = scmp.ne.s32.totalorder %s54, %s55
      %p67 = scmp.eq.s32.totalorder %s24, 1
      %p68 = por %p66, %p67
      %p70 = scmp.ne.s32.totalorder %s55, %s69
      %p71 = scmp.eq.s32.totalorder %s24, 0
      %p72 = por %p70, %p71
      %s74 = sadd.s32 %s73, 1
      %p77 = scmp.eq.s32.totalorder %s18, 1
      %p78 = scmp.ne.s32.totalorder %s73, %s75
      %p79 = scmp.eq.s32.totalorder %s18, 0
      %p80 = por %p78, %p79
      %p81 = scmp.ne.s32.totalorder %s73, %s75
      %p82 = scmp.eq.s32.totalorder %s23, 1
      %p83 = por %p81, %p82
      %p84 = scmp.ne.s32.totalorder %s75, %s76
      %p85 = scmp.eq.s32.totalorder %s23, 0
      %p86 = por %p84, %p85
      %p87 = scmp.ne.s32.totalorder %s75, %s76
      %p88 = scmp.eq.s32.totalorder %s24, 1
      %p89 = por %p87, %p88
      %p91 = scmp.ne.s32.totalorder %s76, %s90
      %p92 = scmp.eq.s32.totalorder %s24, 0
      %p93 = por %p91, %p92
      %s95 = sadd.s32 %s94, 1
      %p98 = scmp.eq.s32.totalorder %s18, 1
      %p99 = scmp.ne.s32.totalorder %s94, %s96
      %p100 = scmp.eq.s32.totalorder %s18, 0
      %p101 = por %p99, %p100
      %p102 = scmp.ne.s32.totalorder %s94, %s96
      %p103 = scmp.eq.s32.totalorder %s23, 1
      %p104 = por %p102, %p103
      %p105 = scmp.ne.s32.totalorder %s96, %s97
      %p106 = scmp.eq.s32.totalorder %s23, 0
      %p107 = por %p105, %p106
      %p108 = scmp.ne.s32.totalorder %s96, %s97
      %p109 = scmp.eq.s32.totalorder %s24, 1
      %p110 = por %p108, %p109
      %p112 = scmp.ne.s32.totalorder %s97, %s111
      %p113 = scmp.eq.s32.totalorder %s24, 0
      %p114 = por %p112, %p113
      %s116 = sadd.s32 %s115, 1
      %p119 = scmp.eq.s32.totalorder %s18, 1
      %p120 = scmp.ne.s32.totalorder %s115, %s117
      %p121 = scmp.eq.s32.totalorder %s18, 0
      %p122 = por %p120, %p121
      %p123 = scmp.ne.s32.totalorder %s115, %s117
      %p124 = scmp.eq.s32.totalorder %s23, 1
      %p125 = por %p123, %p124
      %p126 = scmp.ne.s32.totalorder %s117, %s118
      %p127 = scmp.eq.s32.totalorder %s23, 0
      %p128 = por %p126, %p127
      %p129 = scmp.ne.s32.totalorder %s117, %s118
      %p130 = scmp.eq.s32.totalorder %s24, 1
      %p131 = por %p129, %p130
      %p133 = scmp.ne.s32.totalorder %s118, %s132
      %p134 = scmp.eq.s32.totalorder %s24, 0
      %p135 = por %p133, %p134
      %s136 = ssub.s32 %s18, %s25
      %p137 = scmp.eq.s32.totalorder %s136, 0
      %s139 = sadd.s32 %s138, 1
      %s140 = scalar_select %p137, %s138, %s139
      %p143 = pneg %p137
      %p144 = scmp.eq.s32.totalorder %s18, 1
      %p145 = por %p143, %p144
      %p146 = scmp.ne.s32.totalorder %s138, %s141
      %p147 = scmp.eq.s32.totalorder %s18, 0
      %p148 = por %p146, %p147
      %p149 = scmp.ne.s32.totalorder %s138, %s141
      %p150 = scmp.eq.s32.totalorder %s23, 1
      %p151 = por %p149, %p150
      %p152 = scmp.ne.s32.totalorder %s141, %s142
      %p153 = scmp.eq.s32.totalorder %s23, 0
      %p154 = por %p152, %p153
      %p155 = scmp.ne.s32.totalorder %s141, %s142
      %p156 = scmp.eq.s32.totalorder %s24, 1
      %p157 = por %p155, %p156
      %p159 = scmp.ne.s32.totalorder %s142, %s158
      %p160 = scmp.eq.s32.totalorder %s24, 0
      %p161 = por %p159, %p160
      %p162 = scmp.le.s32.totalorder 1, %s18
      %p163 = scmp.lt.s32.totalorder %s18, 3
      %p164 = pnand %p162, %p163
      %p165 = pneg %p164
      // Predicated region
      $region9: #{tpu_custom_call.1} parent=5 // pred_check
        _
      $region10: #{tpu_custom_call.1} parent=5 // pred_check_branch
        %167 = sbr.rel (%p164) target = $region12
      $region11: #{tpu_custom_call.1} parent=5 // pred_region
        %s168 = ssub.s32 %s18, 1
        // Predicated region
        $region13: #{tpu_custom_call.1} parent=11 // pred_check
          %p169 = pneg %p65
        $region14: #{tpu_custom_call.1} parent=11 // pred_check_branch
          %171 = sbr.rel (%p169) target = $region16
        $region15: #{tpu_custom_call.1} parent=11 // pred_region
          %s173 = ssub.s32 256, 256
          %174 = vsyncadd [#allocation7], %s173
          %s175 = sshll.u32 [#allocation6], 4
          %s176 = int_to_ptr.vmem [resolvable:$true] %s175
          %181 = dma.hbm_to_vmem [thread:$0]  %s1, 256, %s176, [#allocation7], 64, 64, 4
        $region16: #{tpu_custom_call.1} parent=11 // pred_fallthru
          _
        // Predicated region
        $region17: #{tpu_custom_call.1} parent=11 // pred_check
          %p182 = pneg %p86
        $region18: #{tpu_custom_call.1} parent=11 // pred_check_branch
          %184 = sbr.rel (%p182) target = $region20
        $region19: #{tpu_custom_call.1} parent=11 // pred_region
          _
        $region20: #{tpu_custom_call.1} parent=11 // pred_fallthru
          _
        // Predicated region
        $region21: #{tpu_custom_call.1} parent=11 // pred_check
          %p185 = pneg %p107
        $region22: #{tpu_custom_call.1} parent=11 // pred_check_branch
          %187 = sbr.rel (%p185) target = $region24
        $region23: #{tpu_custom_call.1} parent=11 // pred_region
          %s189 = ssub.s32 256, 256
          %190 = vsyncadd [#allocation7], %s189
          %s191 = sshll.u32 [#allocation8], 4
          %s192 = int_to_ptr.vmem [resolvable:$true] %s191
          %197 = dma.hbm_to_vmem [thread:$0]  %s3, 256, %s192, [#allocation7], 64, 64, 4
        $region24: #{tpu_custom_call.1} parent=11 // pred_fallthru
          _
        // Predicated region
        $region25: #{tpu_custom_call.1} parent=11 // pred_check
          %p198 = pneg %p128
        $region26: #{tpu_custom_call.1} parent=11 // pred_check_branch
          %200 = sbr.rel (%p198) target = $region28
        $region27: #{tpu_custom_call.1} parent=11 // pred_region
          _
        $region28: #{tpu_custom_call.1} parent=11 // pred_fallthru
          _
      $region12: #{tpu_custom_call.1} parent=5 // pred_fallthru
        _
      %p201 = scmp.lt.s32.totalorder %s18, 2
      // Predicated region
      $region29: #{tpu_custom_call.1} parent=5 // pred_check
        %p202 = pneg %p201
      $region30: #{tpu_custom_call.1} parent=5 // pred_check_branch
        %204 = sbr.rel (%p202) target = $region32
      $region31: #{tpu_custom_call.1} parent=5 // pred_region
        // Predicated region
        $region33: #{tpu_custom_call.1} parent=31 // pred_check
          %p205 = pneg %p38
        $region34: #{tpu_custom_call.1} parent=31 // pred_check_branch
          %207 = sbr.rel (%p205) target = $region36
        $region35: #{tpu_custom_call.1} parent=31 // pred_region
          %s208 = sand.u32 %s28, 1
          %s209 = scalar_lea.sflag [#allocation4], %s208
          %s210 = sand.u32 %s28, 1
          %s211 = smul.addr %s210, 8
          %s212 = scalar_lea.vmem [#allocation3], %s211
          %s214 = ssub.s32 128, 128
          %215 = vsyncadd %s209, %s214
          %s216 = smul.addr %s18, 128
          %s217 = scalar_lea.hbm %s0, %s216
          %s219 = sshll.u32 %s212, 4
          %s220 = int_to_ptr.vmem [resolvable:$true] %s219
          %222 = dma.hbm_to_vmem [thread:$0]  %s217, 128, %s220, %s209
        $region36: #{tpu_custom_call.1} parent=31 // pred_fallthru
          _
      $region32: #{tpu_custom_call.1} parent=5 // pred_fallthru
        _
      %p223 = scmp.le.s32.totalorder 1, %s18
      %p224 = scmp.lt.s32.totalorder %s18, 3
      %p225 = pnand %p223, %p224
      %p226 = pneg %p225
      // Predicated region
      $region37: #{tpu_custom_call.1} parent=5 // pred_check
        _
      $region38: #{tpu_custom_call.1} parent=5 // pred_check_branch
        %228 = sbr.rel (%p225) target = $region40
      $region39: #{tpu_custom_call.1} parent=5 // pred_region
        %s229 = ssub.s32 %s18, 1
        %s230 = sand.u32 %s31, 1
        %s231 = scalar_lea.sflag [#allocation4], %s230
        %s232 = sand.u32 %s31, 1
        %s233 = smul.addr %s232, 8
        %s234 = scalar_lea.vmem [#allocation3], %s233
        // Predicated region
        $region41: #{tpu_custom_call.1} parent=39 // pred_check
          %p235 = pneg %p44
        $region42: #{tpu_custom_call.1} parent=39 // pred_check_branch
          %237 = sbr.rel (%p235) target = $region44
        $region43: #{tpu_custom_call.1} parent=39 // pred_region
          %238 = dma.done %s231, 128
        $region44: #{tpu_custom_call.1} parent=39 // pred_fallthru
          _
        // Predicated region
        $region45: #{tpu_custom_call.1} parent=39 // pred_check
          %p239 = pneg %p65
        $region46: #{tpu_custom_call.1} parent=39 // pred_check_branch
          %241 = sbr.rel (%p239) target = $region48
        $region47: #{tpu_custom_call.1} parent=39 // pred_region
          %242 = dma.done [#allocation7], 256
        $region48: #{tpu_custom_call.1} parent=39 // pred_fallthru
          _
        // Predicated region
        $region49: #{tpu_custom_call.1} parent=39 // pred_check
          %p243 = pneg %p107
        $region50: #{tpu_custom_call.1} parent=39 // pred_check_branch
          %245 = sbr.rel (%p243) target = $region52
        $region51: #{tpu_custom_call.1} parent=39 // pred_region
          %246 = dma.done [#allocation7], 256
        $region52: #{tpu_custom_call.1} parent=39 // pred_fallthru
          _
        %s247 = sand.u32 %s31, 1
        %s248 = scalar_lea.sflag [#allocation4], %s247
        %s249 = sand.u32 %s31, 1
        %s250 = smul.addr %s249, 8
        %s251 = scalar_lea.vmem [#allocation3], %s250
        %p252 = pneg %p44
        %p253 = pneg %p41
        %p254 = pneg %p65
        %p255 = pneg %p62
        %p256 = pneg %p86
        %p257 = pneg %p83
        %p258 = pneg %p107
        %p259 = pneg %p104
        %p260 = pneg %p128
        %p261 = pneg %p125
        %p262 = pneg %p154
        %p263 = pneg %p151
        %s264 = sand.u32 %s141, 1
        %s265 = scalar_lea.sflag [#allocation5], %s264
        %s266 = sand.u32 %s141, 1
        %s267 = smul.addr %s266, 8
        %s268 = scalar_lea.vmem [#allocation9], %s267
        %v270 = vld [vmem:[%s234] sm:$0xff]
        %v271 = vpack.c.bf16 %v270, %v270
        %v272 = vld [vmem:[#allocation6] sm:$0xf]
        %v273 = vld [vmem:[#allocation6 + $0x4] sm:$0xf]
        %v274 = vld [vmem:[#allocation6 + $0x8] sm:$0xf]
        %v275 = vld [vmem:[#allocation6 + $0xc] sm:$0xf]
        %v276 = vld [vmem:[%s2] sm:$0x1]
        %v278 = vlaneseq
        %v279 = vshrl.u32 %v278, 7
        %v280 = vsub.s32 0, %v279
        %v281 = vrot.slane %v276, %v280
        %v287 = vunpack.c.l.b16 %v272
        %v288 = vunpack.c.l.b16 %v273
        %v289 = vunpack.c.l.b16 %v274
        %v290 = vunpack.c.l.b16 %v275
        %v291 = vpack.c.b16 %v288, %v287
        %v292 = vpack.c.b16 %v290, %v289
        %vm295 = vcmask 261120
        %v297 = vsel %vm295, %v271, 0
        %299 = vmatprep.subr.bf16.mxu0 0
        %300 = vmatpush1.bf16.msra.mxu0 0
        %301 = vmatprep.subr.bf16.mxu0 0
        %302 = vmatpush1.bf16.msra.mxu0 0
        %303 = vmatprep.subr.bf16.mxu0 0
        %304 = vmatpush1.bf16.msra.mxu0 0
        %305 = vmatprep.subr.bf16.mxu0 0
        %306 = vmatpush1.bf16.msra.mxu0 0
        %307 = vmatprep.subr.bf16.mxu0 0
        %308 = vmatpush1.bf16.msra.mxu0 0
        %309 = vmatprep.subr.bf16.mxu0 0
        %310 = vmatpush1.bf16.msra.mxu0 0
        %311 = vmatprep.subr.bf16.mxu0 0
        %312 = vmatpush1.bf16.msra.mxu0 %v292
        %313 = vmatprep.subr.bf16.mxu0 0
        %314 = vmatpush1.bf16.msra.mxu0 %v291
        %315 = vmatprep.subr.bf16.mxu0 0
        %316 = vmatpush2.bf16.msra.mxu0 0
        %317 = vmatprep.subr.bf16.mxu0 0
        %318 = vmatpush2.bf16.msra.mxu0 0
        %319 = vmatprep.subr.bf16.mxu0 0
        %320 = vmatpush2.bf16.msra.mxu0 0
        %321 = vmatprep.subr.bf16.mxu0 0
        %322 = vmatpush2.bf16.msra.mxu0 0
        %323 = vmatprep.subr.bf16.mxu0 0
        %324 = vmatpush2.bf16.msra.mxu0 0
        %325 = vmatprep.subr.bf16.mxu0 0
        %326 = vmatpush2.bf16.msra.mxu0 0
        %327 = vmatprep.subr.bf16.mxu0 0
        %328 = vmatpush2.bf16.msra.mxu0 0
        %329 = vmatprep.subr.bf16.mxu0 0
        %330 = vmatpush2.bf16.msra.mxu0 0
        %331 = vmatprep.mubr.bf16.mxu0 0
        %332 = vmatmul.mubr.bf16.gmra.mxu0 %v297
        %v333 = vpop.f32.mrf.mxu0
        %v334 = vadd.f32 %v281, %v333
        %v335 = vpop.f32.mrf.mxu0
        %v336 = vpop.f32.mrf.mxu0
        %v337 = vpop.f32.mrf.mxu0
        %338 = vdwg.mxu0
        %v339 = vpack.c.bf16 %v334, %v334
        %v340 = vld [vmem:[#allocation8] sm:$0xf]
        %v341 = vld [vmem:[#allocation8 + $0x4] sm:$0xf]
        %v342 = vld [vmem:[#allocation8 + $0x8] sm:$0xf]
        %v343 = vld [vmem:[#allocation8 + $0xc] sm:$0xf]
        %v344 = vld [vmem:[%s4] sm:$0x1]
        %v346 = vlaneseq
        %v347 = vshrl.u32 %v346, 7
        %v348 = vsub.s32 0, %v347
        %v349 = vrot.slane %v344, %v348
        %v355 = vunpack.c.l.b16 %v340
        %v356 = vunpack.c.l.b16 %v341
        %v357 = vunpack.c.l.b16 %v342
        %v358 = vunpack.c.l.b16 %v343
        %v359 = vpack.c.b16 %v356, %v355
        %v360 = vpack.c.b16 %v358, %v357
        %363 = vmatprep.subr.bf16.mxu0 0
        %364 = vmatpush1.bf16.msra.mxu0 0
        %365 = vmatprep.subr.bf16.mxu0 0
        %366 = vmatpush1.bf16.msra.mxu0 0
        %367 = vmatprep.subr.bf16.mxu0 0
        %368 = vmatpush1.bf16.msra.mxu0 0
        %369 = vmatprep.subr.bf16.mxu0 0
        %370 = vmatpush1.bf16.msra.mxu0 0
        %371 = vmatprep.subr.bf16.mxu0 0
        %372 = vmatpush1.bf16.msra.mxu0 0
        %373 = vmatprep.subr.bf16.mxu0 0
        %374 = vmatpush1.bf16.msra.mxu0 0
        %375 = vmatprep.subr.bf16.mxu0 0
        %376 = vmatpush1.bf16.msra.mxu0 %v360
        %377 = vmatprep.subr.bf16.mxu0 0
        %378 = vmatpush1.bf16.msra.mxu0 %v359
        %379 = vmatprep.subr.bf16.mxu0 0
        %380 = vmatpush2.bf16.msra.mxu0 0
        %381 = vmatprep.subr.bf16.mxu0 0
        %382 = vmatpush2.bf16.msra.mxu0 0
        %383 = vmatprep.subr.bf16.mxu0 0
        %384 = vmatpush2.bf16.msra.mxu0 0
        %385 = vmatprep.subr.bf16.mxu0 0
        %386 = vmatpush2.bf16.msra.mxu0 0
        %387 = vmatprep.subr.bf16.mxu0 0
        %388 = vmatpush2.bf16.msra.mxu0 0
        %389 = vmatprep.subr.bf16.mxu0 0
        %390 = vmatpush2.bf16.msra.mxu0 0
        %391 = vmatprep.subr.bf16.mxu0 0
        %392 = vmatpush2.bf16.msra.mxu0 0
        %393 = vmatprep.subr.bf16.mxu0 0
        %394 = vmatpush2.bf16.msra.mxu0 0
        %395 = vmatprep.mubr.bf16.mxu0 0
        %396 = vmatmul.mubr.bf16.gmra.mxu0 %v297
        %v397 = vpop.f32.mrf.mxu0
        %v398 = vadd.f32 %v349, %v397
        %v399 = vpop.f32.mrf.mxu0
        %v400 = vpop.f32.mrf.mxu0
        %v401 = vpop.f32.mrf.mxu0
        %402 = vdwg.mxu0
        %v403 = vpack.c.bf16 %v398, %v398
        %vm404 = vcmask 64512
        %v406 = vsel %vm404, %v339, 0
        %v409 = vsel %vm404, %v403, 0
        %411 = vmatprep.subr.bf16.mxu0 0
        %412 = vmatpush1.bf16.xpose.msra.mxu0 0
        %413 = vmatprep.subr.bf16.mxu0 0
        %414 = vmatpush1.bf16.xpose.msra.mxu0 0
        %415 = vmatprep.subr.bf16.mxu0 0
        %416 = vmatpush1.bf16.xpose.msra.mxu0 0
        %417 = vmatprep.subr.bf16.mxu0 0
        %418 = vmatpush1.bf16.xpose.msra.mxu0 0
        %419 = vmatprep.subr.bf16.mxu0 0
        %420 = vmatpush1.bf16.xpose.msra.mxu0 0
        %421 = vmatprep.subr.bf16.mxu0 0
        %422 = vmatpush1.bf16.xpose.msra.mxu0 0
        %423 = vmatprep.subr.bf16.mxu0 0
        %424 = vmatpush1.bf16.xpose.msra.mxu0 0
        %425 = vmatprep.subr.bf16.mxu0 0
        %426 = vmatpush1.bf16.xpose.msra.mxu0 %v409
        %427 = vmatprep.subr.bf16.mxu0 0
        %428 = vmatpush2.bf16.xpose.msra.mxu0 0
        %429 = vmatprep.subr.bf16.mxu0 0
        %430 = vmatpush2.bf16.xpose.msra.mxu0 0
        %431 = vmatprep.subr.bf16.mxu0 0
        %432 = vmatpush2.bf16.xpose.msra.mxu0 0
        %433 = vmatprep.subr.bf16.mxu0 0
        %434 = vmatpush2.bf16.xpose.msra.mxu0 0
        %435 = vmatprep.subr.bf16.mxu0 0
        %436 = vmatpush2.bf16.xpose.msra.mxu0 0
        %437 = vmatprep.subr.bf16.mxu0 0
        %438 = vmatpush2.bf16.xpose.msra.mxu0 0
        %439 = vmatprep.subr.bf16.mxu0 0
        %440 = vmatpush2.bf16.xpose.msra.mxu0 0
        %441 = vmatprep.subr.bf16.mxu0 0
        %442 = vmatpush2.bf16.xpose.msra.mxu0 0
        %443 = vmatprep.mubr.bf16.mxu0 0
        %444 = vmatmul.mubr.bf16.gmra.mxu0 %v406
        %v445 = vpop.f32.mrf.mxu0
        %v446 = vadd.f32 0.0, %v445
        %v447 = vpop.f32.mrf.mxu0
        %v448 = vpop.f32.mrf.mxu0
        %v449 = vpop.f32.mrf.mxu0
        %450 = vdwg.mxu0
        %v451 = vsel %vm404, %v446, -inf
        %452 = vmax.xlane.f32.xlu0 %v451
        %v453 = vpop.xlane.xlu0 %452
        %v454 = vsub.f32 %v446, %v453
        %v455 = vmul.f32 %v454, 1.442695
        %v456 = vpow.pop %v455
        %v457 = vsel %vm404, %v456, 0.0
        %458 = vadd.xlane.f32.xlu0 %v457
        %v459 = vpop.xlane.xlu0 %458
        %v460 = vpack.c.bf16 %v456, %v456
        %v462 = vsel %vm404, %v460, 0
        %vm464 = vcmask 1043456
        %v465 = vsel %vm464, %v403, 0
        %467 = vmatprep.subr.bf16.mxu0 0
        %468 = vmatpush1.bf16.msra.mxu0 0
        %469 = vmatprep.subr.bf16.mxu0 0
        %470 = vmatpush1.bf16.msra.mxu0 0
        %471 = vmatprep.subr.bf16.mxu0 0
        %472 = vmatpush1.bf16.msra.mxu0 0
        %473 = vmatprep.subr.bf16.mxu0 0
        %474 = vmatpush1.bf16.msra.mxu0 0
        %475 = vmatprep.subr.bf16.mxu0 0
        %476 = vmatpush1.bf16.msra.mxu0 0
        %477 = vmatprep.subr.bf16.mxu0 0
        %478 = vmatpush1.bf16.msra.mxu0 0
        %479 = vmatprep.subr.bf16.mxu0 0
        %480 = vmatpush1.bf16.msra.mxu0 0
        %481 = vmatprep.subr.bf16.mxu0 0
        %482 = vmatpush1.bf16.msra.mxu0 %v465
        %483 = vmatprep.subr.bf16.mxu0 0
        %484 = vmatpush2.bf16.msra.mxu0 0
        %485 = vmatprep.subr.bf16.mxu0 0
        %486 = vmatpush2.bf16.msra.mxu0 0
        %487 = vmatprep.subr.bf16.mxu0 0
        %488 = vmatpush2.bf16.msra.mxu0 0
        %489 = vmatprep.subr.bf16.mxu0 0
        %490 = vmatpush2.bf16.msra.mxu0 0
        %491 = vmatprep.subr.bf16.mxu0 0
        %492 = vmatpush2.bf16.msra.mxu0 0
        %493 = vmatprep.subr.bf16.mxu0 0
        %494 = vmatpush2.bf16.msra.mxu0 0
        %495 = vmatprep.subr.bf16.mxu0 0
        %496 = vmatpush2.bf16.msra.mxu0 0
        %497 = vmatprep.subr.bf16.mxu0 0
        %498 = vmatpush2.bf16.msra.mxu0 0
        %499 = vmatprep.mubr.bf16.mxu0 0
        %500 = vmatmul.mubr.bf16.gmra.mxu0 %v462
        %v501 = vpop.f32.mrf.mxu0
        %v502 = vadd.f32 0.0, %v501
        %v503 = vpop.f32.mrf.mxu0
        %v504 = vpop.f32.mrf.mxu0
        %v505 = vpop.f32.mrf.mxu0
        %506 = vdwg.mxu0
        %v507 = vrcp.pop %v459
        %v508 = vmul.f32 %v502, %v507
        %509 = vst.msk [vmem:[#allocation2] sm:$0xff] %vm404, %v508
        %511 = vrot.lane.b32.xlu0 %v339, 120
        %v512 = vpop.permute.xlu0 %511
        %514 = vrot.lane.b32.xlu0 %v403, 120
        %v515 = vpop.permute.xlu0 %514
        %v517 = vsel %vm404, %v512, 0
        %v520 = vsel %vm404, %v515, 0
        %522 = vmatprep.subr.bf16.mxu0 0
        %523 = vmatpush1.bf16.xpose.msra.mxu0 0
        %524 = vmatprep.subr.bf16.mxu0 0
        %525 = vmatpush1.bf16.xpose.msra.mxu0 0
        %526 = vmatprep.subr.bf16.mxu0 0
        %527 = vmatpush1.bf16.xpose.msra.mxu0 0
        %528 = vmatprep.subr.bf16.mxu0 0
        %529 = vmatpush1.bf16.xpose.msra.mxu0 0
        %530 = vmatprep.subr.bf16.mxu0 0
        %531 = vmatpush1.bf16.xpose.msra.mxu0 0
        %532 = vmatprep.subr.bf16.mxu0 0
        %533 = vmatpush1.bf16.xpose.msra.mxu0 0
        %534 = vmatprep.subr.bf16.mxu0 0
        %535 = vmatpush1.bf16.xpose.msra.mxu0 0
        %536 = vmatprep.subr.bf16.mxu0 0
        %537 = vmatpush1.bf16.xpose.msra.mxu0 %v520
        %538 = vmatprep.subr.bf16.mxu0 0
        %539 = vmatpush2.bf16.xpose.msra.mxu0 0
        %540 = vmatprep.subr.bf16.mxu0 0
        %541 = vmatpush2.bf16.xpose.msra.mxu0 0
        %542 = vmatprep.subr.bf16.mxu0 0
        %543 = vmatpush2.bf16.xpose.msra.mxu0 0
        %544 = vmatprep.subr.bf16.mxu0 0
        %545 = vmatpush2.bf16.xpose.msra.mxu0 0
        %546 = vmatprep.subr.bf16.mxu0 0
        %547 = vmatpush2.bf16.xpose.msra.mxu0 0
        %548 = vmatprep.subr.bf16.mxu0 0
        %549 = vmatpush2.bf16.xpose.msra.mxu0 0
        %550 = vmatprep.subr.bf16.mxu0 0
        %551 = vmatpush2.bf16.xpose.msra.mxu0 0
        %552 = vmatprep.subr.bf16.mxu0 0
        %553 = vmatpush2.bf16.xpose.msra.mxu0 0
        %554 = vmatprep.mubr.bf16.mxu0 0
        %555 = vmatmul.mubr.bf16.gmra.mxu0 %v517
        %v556 = vpop.f32.mrf.mxu0
        %v557 = vadd.f32 0.0, %v556
        %v558 = vpop.f32.mrf.mxu0
        %v559 = vpop.f32.mrf.mxu0
        %v560 = vpop.f32.mrf.mxu0
        %561 = vdwg.mxu0
        %v562 = vsel %vm404, %v557, -inf
        %563 = vmax.xlane.f32.xlu0 %v562
        %v564 = vpop.xlane.xlu0 %563
        %v565 = vsub.f32 %v557, %v564
        %v566 = vmul.f32 %v565, 1.442695
        %v567 = vpow.pop %v566
        %v568 = vsel %vm404, %v567, 0.0
        %569 = vadd.xlane.f32.xlu0 %v568
        %v570 = vpop.xlane.xlu0 %569
        %v571 = vpack.c.bf16 %v567, %v567
        %v573 = vsel %vm404, %v571, 0
        %v575 = vsel %vm464, %v515, 0
        %577 = vmatprep.subr.bf16.mxu0 0
        %578 = vmatpush1.bf16.msra.mxu0 0
        %579 = vmatprep.subr.bf16.mxu0 0
        %580 = vmatpush1.bf16.msra.mxu0 0
        %581 = vmatprep.subr.bf16.mxu0 0
        %582 = vmatpush1.bf16.msra.mxu0 0
        %583 = vmatprep.subr.bf16.mxu0 0
        %584 = vmatpush1.bf16.msra.mxu0 0
        %585 = vmatprep.subr.bf16.mxu0 0
        %586 = vmatpush1.bf16.msra.mxu0 0
        %587 = vmatprep.subr.bf16.mxu0 0
        %588 = vmatpush1.bf16.msra.mxu0 0
        %589 = vmatprep.subr.bf16.mxu0 0
        %590 = vmatpush1.bf16.msra.mxu0 0
        %591 = vmatprep.subr.bf16.mxu0 0
        %592 = vmatpush1.bf16.msra.mxu0 %v575
        %593 = vmatprep.subr.bf16.mxu0 0
        %594 = vmatpush2.bf16.msra.mxu0 0
        %595 = vmatprep.subr.bf16.mxu0 0
        %596 = vmatpush2.bf16.msra.mxu0 0
        %597 = vmatprep.subr.bf16.mxu0 0
        %598 = vmatpush2.bf16.msra.mxu0 0
        %599 = vmatprep.subr.bf16.mxu0 0
        %600 = vmatpush2.bf16.msra.mxu0 0
        %601 = vmatprep.subr.bf16.mxu0 0
        %602 = vmatpush2.bf16.msra.mxu0 0
        %603 = vmatprep.subr.bf16.mxu0 0
        %604 = vmatpush2.bf16.msra.mxu0 0
        %605 = vmatprep.subr.bf16.mxu0 0
        %606 = vmatpush2.bf16.msra.mxu0 0
        %607 = vmatprep.subr.bf16.mxu0 0
        %608 = vmatpush2.bf16.msra.mxu0 0
        %609 = vmatprep.mubr.bf16.mxu0 0
        %610 = vmatmul.mubr.bf16.gmra.mxu0 %v573
        %v611 = vpop.f32.mrf.mxu0
        %v612 = vadd.f32 0.0, %v611
        %v613 = vpop.f32.mrf.mxu0
        %v614 = vpop.f32.mrf.mxu0
        %v615 = vpop.f32.mrf.mxu0
        %616 = vdwg.mxu0
        %v617 = vrcp.pop %v570
        %v618 = vmul.f32 %v612, %v617
        %620 = vrot.lane.b32.xlu0 %v618, 8
        %v621 = vpop.permute.xlu0 %620
        %vm623 = vcmask 130112
        %624 = vst.msk [vmem:[#allocation2] sm:$0xff] %vm623, %v621
        %625 = vrot.lane.b32.xlu0 %v339, 112
        %v626 = vpop.permute.xlu0 %625
        %627 = vrot.lane.b32.xlu0 %v403, 112
        %v628 = vpop.permute.xlu0 %627
        %v630 = vsel %vm404, %v626, 0
        %v633 = vsel %vm404, %v628, 0
        %635 = vmatprep.subr.bf16.mxu0 0
        %636 = vmatpush1.bf16.xpose.msra.mxu0 0
        %637 = vmatprep.subr.bf16.mxu0 0
        %638 = vmatpush1.bf16.xpose.msra.mxu0 0
        %639 = vmatprep.subr.bf16.mxu0 0
        %640 = vmatpush1.bf16.xpose.msra.mxu0 0
        %641 = vmatprep.subr.bf16.mxu0 0
        %642 = vmatpush1.bf16.xpose.msra.mxu0 0
        %643 = vmatprep.subr.bf16.mxu0 0
        %644 = vmatpush1.bf16.xpose.msra.mxu0 0
        %645 = vmatprep.subr.bf16.mxu0 0
        %646 = vmatpush1.bf16.xpose.msra.mxu0 0
        %647 = vmatprep.subr.bf16.mxu0 0
        %648 = vmatpush1.bf16.xpose.msra.mxu0 0
        %649 = vmatprep.subr.bf16.mxu0 0
        %650 = vmatpush1.bf16.xpose.msra.mxu0 %v633
        %651 = vmatprep.subr.bf16.mxu0 0
        %652 = vmatpush2.bf16.xpose.msra.mxu0 0
        %653 = vmatprep.subr.bf16.mxu0 0
        %654 = vmatpush2.bf16.xpose.msra.mxu0 0
        %655 = vmatprep.subr.bf16.mxu0 0
        %656 = vmatpush2.bf16.xpose.msra.mxu0 0
        %657 = vmatprep.subr.bf16.mxu0 0
        %658 = vmatpush2.bf16.xpose.msra.mxu0 0
        %659 = vmatprep.subr.bf16.mxu0 0
        %660 = vmatpush2.bf16.xpose.msra.mxu0 0
        %661 = vmatprep.subr.bf16.mxu0 0
        %662 = vmatpush2.bf16.xpose.msra.mxu0 0
        %663 = vmatprep.subr.bf16.mxu0 0
        %664 = vmatpush2.bf16.xpose.msra.mxu0 0
        %665 = vmatprep.subr.bf16.mxu0 0
        %666 = vmatpush2.bf16.xpose.msra.mxu0 0
        %667 = vmatprep.mubr.bf16.mxu0 0
        %668 = vmatmul.mubr.bf16.gmra.mxu0 %v630
        %v669 = vpop.f32.mrf.mxu0
        %v670 = vadd.f32 0.0, %v669
        %v671 = vpop.f32.mrf.mxu0
        %v672 = vpop.f32.mrf.mxu0
        %v673 = vpop.f32.mrf.mxu0
        %674 = vdwg.mxu0
        %v675 = vsel %vm404, %v670, -inf
        %676 = vmax.xlane.f32.xlu0 %v675
        %v677 = vpop.xlane.xlu0 %676
        %v678 = vsub.f32 %v670, %v677
        %v679 = vmul.f32 %v678, 1.442695
        %v680 = vpow.pop %v679
        %v681 = vsel %vm404, %v680, 0.0
        %682 = vadd.xlane.f32.xlu0 %v681
        %v683 = vpop.xlane.xlu0 %682
        %v684 = vpack.c.bf16 %v680, %v680
        %v686 = vsel %vm404, %v684, 0
        %v688 = vsel %vm464, %v628, 0
        %690 = vmatprep.subr.bf16.mxu0 0
        %691 = vmatpush1.bf16.msra.mxu0 0
        %692 = vmatprep.subr.bf16.mxu0 0
        %693 = vmatpush1.bf16.msra.mxu0 0
        %694 = vmatprep.subr.bf16.mxu0 0
        %695 = vmatpush1.bf16.msra.mxu0 0
        %696 = vmatprep.subr.bf16.mxu0 0
        %697 = vmatpush1.bf16.msra.mxu0 0
        %698 = vmatprep.subr.bf16.mxu0 0
        %699 = vmatpush1.bf16.msra.mxu0 0
        %700 = vmatprep.subr.bf16.mxu0 0
        %701 = vmatpush1.bf16.msra.mxu0 0
        %702 = vmatprep.subr.bf16.mxu0 0
        %703 = vmatpush1.bf16.msra.mxu0 0
        %704 = vmatprep.subr.bf16.mxu0 0
        %705 = vmatpush1.bf16.msra.mxu0 %v688
        %706 = vmatprep.subr.bf16.mxu0 0
        %707 = vmatpush2.bf16.msra.mxu0 0
        %708 = vmatprep.subr.bf16.mxu0 0
        %709 = vmatpush2.bf16.msra.mxu0 0
        %710 = vmatprep.subr.bf16.mxu0 0
        %711 = vmatpush2.bf16.msra.mxu0 0
        %712 = vmatprep.subr.bf16.mxu0 0
        %713 = vmatpush2.bf16.msra.mxu0 0
        %714 = vmatprep.subr.bf16.mxu0 0
        %715 = vmatpush2.bf16.msra.mxu0 0
        %716 = vmatprep.subr.bf16.mxu0 0
        %717 = vmatpush2.bf16.msra.mxu0 0
        %718 = vmatprep.subr.bf16.mxu0 0
        %719 = vmatpush2.bf16.msra.mxu0 0
        %720 = vmatprep.subr.bf16.mxu0 0
        %721 = vmatpush2.bf16.msra.mxu0 0
        %722 = vmatprep.mubr.bf16.mxu0 0
        %723 = vmatmul.mubr.bf16.gmra.mxu0 %v686
        %v724 = vpop.f32.mrf.mxu0
        %v725 = vadd.f32 0.0, %v724
        %v726 = vpop.f32.mrf.mxu0
        %v727 = vpop.f32.mrf.mxu0
        %v728 = vpop.f32.mrf.mxu0
        %729 = vdwg.mxu0
        %v730 = vrcp.pop %v683
        %v731 = vmul.f32 %v725, %v730
        %733 = vrot.lane.b32.xlu0 %v731, 16
        %v734 = vpop.permute.xlu0 %733
        %vm736 = vcmask 195712
        %737 = vst.msk [vmem:[#allocation2] sm:$0xff] %vm736, %v734
        %738 = vrot.lane.b32.xlu0 %v339, 104
        %v739 = vpop.permute.xlu0 %738
        %740 = vrot.lane.b32.xlu0 %v403, 104
        %v741 = vpop.permute.xlu0 %740
        %v743 = vsel %vm404, %v739, 0
        %v746 = vsel %vm404, %v741, 0
        %748 = vmatprep.subr.bf16.mxu0 0
        %749 = vmatpush1.bf16.xpose.msra.mxu0 0
        %750 = vmatprep.subr.bf16.mxu0 0
        %751 = vmatpush1.bf16.xpose.msra.mxu0 0
        %752 = vmatprep.subr.bf16.mxu0 0
        %753 = vmatpush1.bf16.xpose.msra.mxu0 0
        %754 = vmatprep.subr.bf16.mxu0 0
        %755 = vmatpush1.bf16.xpose.msra.mxu0 0
        %756 = vmatprep.subr.bf16.mxu0 0
        %757 = vmatpush1.bf16.xpose.msra.mxu0 0
        %758 = vmatprep.subr.bf16.mxu0 0
        %759 = vmatpush1.bf16.xpose.msra.mxu0 0
        %760 = vmatprep.subr.bf16.mxu0 0
        %761 = vmatpush1.bf16.xpose.msra.mxu0 0
        %762 = vmatprep.subr.bf16.mxu0 0
        %763 = vmatpush1.bf16.xpose.msra.mxu0 %v746
        %764 = vmatprep.subr.bf16.mxu0 0
        %765 = vmatpush2.bf16.xpose.msra.mxu0 0
        %766 = vmatprep.subr.bf16.mxu0 0
        %767 = vmatpush2.bf16.xpose.msra.mxu0 0
        %768 = vmatprep.subr.bf16.mxu0 0
        %769 = vmatpush2.bf16.xpose.msra.mxu0 0
        %770 = vmatprep.subr.bf16.mxu0 0
        %771 = vmatpush2.bf16.xpose.msra.mxu0 0
        %772 = vmatprep.subr.bf16.mxu0 0
        %773 = vmatpush2.bf16.xpose.msra.mxu0 0
        %774 = vmatprep.subr.bf16.mxu0 0
        %775 = vmatpush2.bf16.xpose.msra.mxu0 0
        %776 = vmatprep.subr.bf16.mxu0 0
        %777 = vmatpush2.bf16.xpose.msra.mxu0 0
        %778 = vmatprep.subr.bf16.mxu0 0
        %779 = vmatpush2.bf16.xpose.msra.mxu0 0
        %780 = vmatprep.mubr.bf16.mxu0 0
        %781 = vmatmul.mubr.bf16.gmra.mxu0 %v743
        %v782 = vpop.f32.mrf.mxu0
        %v783 = vadd.f32 0.0, %v782
        %v784 = vpop.f32.mrf.mxu0
        %v785 = vpop.f32.mrf.mxu0
        %v786 = vpop.f32.mrf.mxu0
        %787 = vdwg.mxu0
        %v788 = vsel %vm404, %v783, -inf
        %789 = vmax.xlane.f32.xlu0 %v788
        %v790 = vpop.xlane.xlu0 %789
        %v791 = vsub.f32 %v783, %v790
        %v792 = vmul.f32 %v791, 1.442695
        %v793 = vpow.pop %v792
        %v794 = vsel %vm404, %v793, 0.0
        %795 = vadd.xlane.f32.xlu0 %v794
        %v796 = vpop.xlane.xlu0 %795
        %v797 = vpack.c.bf16 %v793, %v793
        %v799 = vsel %vm404, %v797, 0
        %v801 = vsel %vm464, %v741, 0
        %803 = vmatprep.subr.bf16.mxu0 0
        %804 = vmatpush1.bf16.msra.mxu0 0
        %805 = vmatprep.subr.bf16.mxu0 0
        %806 = vmatpush1.bf16.msra.mxu0 0
        %807 = vmatprep.subr.bf16.mxu0 0
        %808 = vmatpush1.bf16.msra.mxu0 0
        %809 = vmatprep.subr.bf16.mxu0 0
        %810 = vmatpush1.bf16.msra.mxu0 0
        %811 = vmatprep.subr.bf16.mxu0 0
        %812 = vmatpush1.bf16.msra.mxu0 0
        %813 = vmatprep.subr.bf16.mxu0 0
        %814 = vmatpush1.bf16.msra.mxu0 0
        %815 = vmatprep.subr.bf16.mxu0 0
        %816 = vmatpush1.bf16.msra.mxu0 0
        %817 = vmatprep.subr.bf16.mxu0 0
        %818 = vmatpush1.bf16.msra.mxu0 %v801
        %819 = vmatprep.subr.bf16.mxu0 0
        %820 = vmatpush2.bf16.msra.mxu0 0
        %821 = vmatprep.subr.bf16.mxu0 0
        %822 = vmatpush2.bf16.msra.mxu0 0
        %823 = vmatprep.subr.bf16.mxu0 0
        %824 = vmatpush2.bf16.msra.mxu0 0
        %825 = vmatprep.subr.bf16.mxu0 0
        %826 = vmatpush2.bf16.msra.mxu0 0
        %827 = vmatprep.subr.bf16.mxu0 0
        %828 = vmatpush2.bf16.msra.mxu0 0
        %829 = vmatprep.subr.bf16.mxu0 0
        %830 = vmatpush2.bf16.msra.mxu0 0
        %831 = vmatprep.subr.bf16.mxu0 0
        %832 = vmatpush2.bf16.msra.mxu0 0
        %833 = vmatprep.subr.bf16.mxu0 0
        %834 = vmatpush2.bf16.msra.mxu0 0
        %835 = vmatprep.mubr.bf16.mxu0 0
        %836 = vmatmul.mubr.bf16.gmra.mxu0 %v799
        %v837 = vpop.f32.mrf.mxu0
        %v838 = vadd.f32 0.0, %v837
        %v839 = vpop.f32.mrf.mxu0
        %v840 = vpop.f32.mrf.mxu0
        %v841 = vpop.f32.mrf.mxu0
        %842 = vdwg.mxu0
        %v843 = vrcp.pop %v796
        %v844 = vmul.f32 %v838, %v843
        %846 = vrot.lane.b32.xlu0 %v844, 24
        %v847 = vpop.permute.xlu0 %846
        %vm849 = vcmask 261312
        %850 = vst.msk [vmem:[#allocation2] sm:$0xff] %vm849, %v847
        %v851 = vld [vmem:[#allocation2] sm:$0xff]
        %852 = vst.msk [vmem:[%s268] sm:$0xff] %vm295, %v851
        %s853 = sand.u32 %s141, 1
        %s854 = scalar_lea.sflag [#allocation5], %s853
        %s855 = sand.u32 %s141, 1
        %s856 = smul.addr %s855, 8
        %s857 = scalar_lea.vmem [#allocation9], %s856
        // Predicated region
        $region53: #{tpu_custom_call.1} parent=39 // pred_check
          %p858 = pneg %p151
        $region54: #{tpu_custom_call.1} parent=39 // pred_check_branch
          %860 = sbr.rel (%p858) target = $region56
        $region55: #{tpu_custom_call.1} parent=39 // pred_region
          %s862 = ssub.s32 128, 128
          %863 = vsyncadd %s854, %s862
          %s864 = smul.addr %s23, 128
          %s865 = scalar_lea.hbm %s5, %s864
          %s867 = sshll.u32 %s857, 4
          %s868 = int_to_ptr.vmem [resolvable:$true] %s867
          %870 = dma.vmem_to_hbm [thread:$0]  %s868, 128, %s865, %s854
        $region56: #{tpu_custom_call.1} parent=39 // pred_fallthru
          _
      $region40: #{tpu_custom_call.1} parent=5 // pred_fallthru
        _
      %p871 = scmp.le.s32.totalorder 2, %s18
      // Predicated region
      $region57: #{tpu_custom_call.1} parent=5 // pred_check
        %p872 = pneg %p871
      $region58: #{tpu_custom_call.1} parent=5 // pred_check_branch
        %874 = sbr.rel (%p872) target = $region60
      $region59: #{tpu_custom_call.1} parent=5 // pred_region
        %s875 = ssub.s32 %s18, 2
        // Predicated region
        $region61: #{tpu_custom_call.1} parent=59 // pred_check
          %p876 = pneg %p157
        $region62: #{tpu_custom_call.1} parent=59 // pred_check_branch
          %878 = sbr.rel (%p876) target = $region64
        $region63: #{tpu_custom_call.1} parent=59 // pred_region
          %s879 = sand.u32 %s142, 1
          %s880 = scalar_lea.sflag [#allocation5], %s879
          %s881 = sand.u32 %s142, 1
          %s882 = smul.addr %s881, 8
          %s883 = scalar_lea.vmem [#allocation9], %s882
          %884 = dma.done %s880, 128
        $region64: #{tpu_custom_call.1} parent=59 // pred_fallthru
          _
      $region60: #{tpu_custom_call.1} parent=5 // pred_fallthru
        _
    $region6: #{tpu_custom_call.1} parent=1 // loop_footer
      %s22 = sadd.s32 1, %s18
    $region7: #{tpu_custom_call.1} parent=1 // loop_footer_branch
      %17 = sbr.rel target = $region3
    $region8: #{tpu_custom_call.1} parent=1 // loop_exit
      _
    %885 = vsyncpa [#allocation4], 1
    %s886 = scalar_lea.sflag [#allocation4], 1
    %887 = vsyncpa %s886, 1
    %888 = vsyncpa [#allocation7], 1
    %889 = vsyncpa [#allocation5], 1
    %s890 = scalar_lea.sflag [#allocation5], 1
    %891 = vsyncpa %s890, 1

</llo_original>
